<compile_context>
chip_gen: v5e
topology: v5e:2x2
jax: 0.10.0
libtpu: 0.0.40
codegen_flags: <defaults>
</compile_context>

<pallas_src>
import jax
import jax.numpy as jnp
from jax.experimental import pallas as pl
from jax.experimental.pallas import tpu as pltpu


def _joint_kernel(enc_ref, predj_ref, we_ref, wo_ref, bo_ref, out_ref, h_ref):
    # h (post-tanh join) depends only on the (b, t) tile, so compute it once on
    # the first V step and persist it in VMEM scratch across the V axis.
    @pl.when(pl.program_id(2) == 0)
    def _():
        enc = enc_ref[0]                                        # [TT, E]
        pred_j = predj_ref[0]                                   # [U,  J] f32
        enc_j = jnp.dot(enc.astype(we_ref.dtype), we_ref[...],
                        preferred_element_type=jnp.float32)     # [TT, J] f32
        h = jnp.tanh(enc_j[:, None, :] + pred_j[None, :, :])    # [TT, U, J] f32
        tt, u, j = h.shape
        # Merge leading dims only (J stays the lane dim) -> layout-free reshape.
        h_ref[...] = h.reshape(tt * u, j).astype(h_ref.dtype)

    # Output projection J -> V tile as one flat 2-D MXU matmul; lane-dense store.
    out2 = jnp.dot(h_ref[...], wo_ref[...],
                   preferred_element_type=jnp.float32) + bo_ref[...]  # [TT*U, tv]
    tt = out_ref.shape[1]
    u = out_ref.shape[2]
    out_ref[0] = out2.reshape(tt, u, out2.shape[-1]).astype(out_ref.dtype)


def _allowed_t_tiles(T):
    """Divisors of T that respect the (8, 128) sublane rule for the enc tile."""
    return [tt for tt in range(1, T + 1)
            if T % tt == 0 and (tt % 8 == 0 or tt == T)]


def _allowed_v_tiles(Vp, max_tv=4096):
    """Multiples of 128 dividing the (padded) vocab, capped for VMEM sanity."""
    cands = [tv for tv in range(128, Vp + 1, 128)
             if Vp % tv == 0 and tv <= max_tv]
    return cands if cands else [Vp]


def _vmem_need_bytes(tt, tv, U, E, J, in_isz, w_isz, out_isz):
    f32 = 4
    return (2 * tt * E * in_isz          # enc input tile (double-buffered)
            + 2 * U * J * f32            # pred_j tile (double-buffered)
            + 2 * E * J * w_isz          # We (constant index; still 2 buffers)
            + 2 * J * tv * w_isz         # Wo tile (double-buffered)
            + 2 * tv * f32               # bo tile
            + 2 * tt * U * tv * out_isz  # output tile (double-buffered)
            + tt * U * J * w_isz         # persistent h scratch
            + tt * J * f32               # enc_j intermediate
            + tt * U * J * f32           # f32 h before cast into scratch
            + tt * U * tv * f32)         # f32 out2 before the dtype cast


def _pick_tiles(T, U, E, J, Vp, in_isz, w_isz, out_isz, budget_bytes):
    """Largest (t_tile * v_tile) whose working set fits the VMEM budget."""
    best = None
    for tv in _allowed_v_tiles(Vp):
        for tt in _allowed_t_tiles(T):
            need = _vmem_need_bytes(tt, tv, U, E, J, in_isz, w_isz, out_isz)
            if need > budget_bytes:
                continue
            score = (tt * tv, tt)        # maximize work/step, prefer big MXU M
            if best is None or score > best[0]:
                best = (score, tt, tv)
    if best is None:
        return _allowed_t_tiles(T)[0], _allowed_v_tiles(Vp)[0]
    return best[1], best[2]


def transducer_joint(enc_out, pred_out, params, *, t_tile=None, v_tile=None,
                     use_bf16=False, out_dtype=None):
    """enc_out: [B,T,E], pred_out: [B,U,P] -> [B,T,U,V] (out_dtype, default f32)."""
    B, T, E = enc_out.shape
    _, U, P = pred_out.shape
    we, be, wp, bp, wo, bo = params       # [E,J],[J], [P,J],[J], [J,V],[V]
    J = we.shape[1]
    V = wo.shape[1]
    out_dtype = enc_out.dtype if out_dtype is None else jnp.dtype(out_dtype)

    # Hoist pred's pre-join linear (only depends on (b, u)) and fold BOTH
    # pre-join biases into it (valid because joint_mode == 'add').
    pred_j = (jnp.dot(pred_out, wp, preferred_element_type=jnp.float32)
              + (bp + be)).astype(jnp.float32)                        # [B, U, J]

    mm_dtype = jnp.bfloat16 if use_bf16 else enc_out.dtype
    enc_mm = enc_out.astype(mm_dtype)
    we_mm = we.astype(mm_dtype)

    # Pad V to a lane-dense multiple of 128 so the dominant output stores are
    # unmasked vst (padding is sliced off outside the kernel).
    Vp = ((V + 127) // 128) * 128
    wo_p = wo if Vp == V else jnp.pad(wo, ((0, 0), (0, Vp - V)))
    bo_p = bo if Vp == V else jnp.pad(bo, ((0, Vp - V),))
    wo_mm = wo_p.astype(mm_dtype)
    bo2 = bo_p.reshape(1, Vp).astype(jnp.float32)

    # Generation-aware VMEM budget / limit.
    try:
        phys_vmem = pltpu.get_tpu_info().vmem_capacity_bytes
    except Exception:
        phys_vmem = 64 << 20                      # conservative fallback
    if phys_vmem >= (100 << 20):                  # v5e / v6e: 128 MiB, 1 TC
        vmem_limit = 104 << 20
        vmem_budget = 80 << 20
        two_tc = False
    else:                                         # v7x: 64 MiB physical, 2 TCs
        vmem_limit = 48 << 20
        vmem_budget = 38 << 20
        two_tc = True

    in_isz = jnp.dtype(mm_dtype).itemsize
    w_isz = jnp.dtype(mm_dtype).itemsize
    out_isz = jnp.dtype(out_dtype).itemsize

    auto_tt, auto_tv = _pick_tiles(T, U, E, J, Vp, in_isz, w_isz, out_isz,
                                   vmem_budget)
    if t_tile is None:
        t_tile = auto_tt
    if v_tile is None:
        v_tile = auto_tv

    # Megacore balance only matters on 2-TC parts; on single-TC v5e/v6e extra
    # grid steps are pure serial overhead, so keep the largest tile there.
    if two_tc and B * (T // t_tile) < 2:
        smaller = [tt for tt in _allowed_t_tiles(T) if tt < t_tile]
        if smaller:
            t_tile = smaller[-1]

    assert T % t_tile == 0, "T must be divisible by the time tile"
    assert t_tile % 8 == 0 or t_tile == T, "t_tile must be 8-aligned or == T"
    assert Vp % v_tile == 0 and v_tile % 128 == 0, "v_tile must be 128-aligned"
    # TODO(synk): no tail handling for T % t_tile != 0 (pad T in the caller).

    grid = (B, T // t_tile, Vp // v_tile)

    cost = pl.CostEstimate(
        flops=2 * B * T * E * J + 2 * B * T * U * J * Vp,
        transcendentals=B * T * U * J,
        bytes_accessed=int(B * T * E * in_isz + B * U * J * 4
                           + E * J * w_isz + J * Vp * w_isz + Vp * 4
                           + B * T * U * Vp * out_isz))

    out = pl.pallas_call(
        _joint_kernel,
        out_shape=jax.ShapeDtypeStruct((B, T, U, Vp), out_dtype),
        grid_spec=pltpu.PrefetchScalarGridSpec(
            num_scalar_prefetch=0,
            grid=grid,
            in_specs=[
                pl.BlockSpec((1, t_tile, E), lambda b, t, v: (b, t, 0)),  # enc
                pl.BlockSpec((1, U, J),      lambda b, t, v: (b, 0, 0)),  # pred_j
                pl.BlockSpec((E, J),         lambda b, t, v: (0, 0)),     # We
                pl.BlockSpec((J, v_tile),    lambda b, t, v: (0, v)),     # Wo tile
                pl.BlockSpec((1, v_tile),    lambda b, t, v: (0, v)),     # bo tile
            ],
            out_specs=pl.BlockSpec((1, t_tile, U, v_tile),
                                   lambda b, t, v: (b, t, 0, v)),
            scratch_shapes=[pltpu.VMEM((t_tile * U, J), mm_dtype)],       # h
        ),
        compiler_params=pltpu.CompilerParams(
            dimension_semantics=("parallel", "parallel", "arbitrary"),
            vmem_limit_bytes=vmem_limit),
        cost_estimate=cost,
    )(enc_mm, pred_j, we_mm, wo_mm, bo2)

    if Vp != V:
        out = out[..., :V]
    return out


def transducer_joint_ref(enc_out, pred_out, params):
    we, be, wp, bp, wo, bo = params
    e = enc_out @ we + be            # [B,T,J]
    p = pred_out @ wp + bp           # [B,U,J]
    h = jnp.tanh(e[:, :, None, :] + p[:, None, :, :])   # [B,T,U,J]
    return h @ wo + bo               # [B,T,U,V]


if __name__ == "__main__":
    # Small, deterministic synthetic config.
    B, T, U = 2, 16, 8
    E, P = 64, 64           # enc_output_size, pred_output_size
    J, V = 128, 256         # join_dim, voca_size

    key = jax.random.PRNGKey(0)
    ks = jax.random.split(key, 8)

    enc_out = jax.random.normal(ks[0], (B, T, E), jnp.float32)
    pred_out = jax.random.normal(ks[1], (B, U, P), jnp.float32)

    # Deterministic parameter init (nn.Linear shapes, stored transposed [in,out]).
    scale = 0.05
    we = scale * jax.random.normal(ks[2], (E, J), jnp.float32)
    be = scale * jax.random.normal(ks[3], (J,), jnp.float32)
    wp = scale * jax.random.normal(ks[4], (P, J), jnp.float32)
    bp = scale * jax.random.normal(ks[5], (J,), jnp.float32)
    wo = scale * jax.random.normal(ks[6], (J, V), jnp.float32)
    bo = scale * jax.random.normal(ks[7], (V,), jnp.float32)
    params = (we, be, wp, bp, wo, bo)

    ref = transducer_joint_ref(enc_out, pred_out, params)

    # f32 path: exact semantics of the PyTorch module.
    out = jax.block_until_ready(transducer_joint(enc_out, pred_out, params))
    assert out.shape == (B, T, U, V)
    assert out.dtype == jnp.float32
    assert jnp.allclose(out, ref, atol=1e-4, rtol=1e-4), float(
        jnp.max(jnp.abs(out - ref)))

    # bf16 operands + bf16 output storage (halves the dominant HBM write
    # traffic; f32 accumulation and f32 tanh are preserved in-kernel).
    out_bf16 = jax.block_until_ready(
        transducer_joint(enc_out, pred_out, params,
                         use_bf16=True, out_dtype=jnp.bfloat16))
    assert out_bf16.dtype == jnp.bfloat16
    assert jnp.allclose(out_bf16.astype(jnp.float32), ref,
                        atol=5e-2, rtol=5e-2), float(
        jnp.max(jnp.abs(out_bf16.astype(jnp.float32) - ref)))

    print("KERNEL_OK")
</pallas_src>

<mosaic_0001>
module attributes {stable_mosaic.version = 11 : i64} {
  func.func @_joint_kernel(%arg0: i32, %arg1: i32, %arg2: i32, %arg3: memref<1x16x64xf32, #tpu.memory_space<vmem>>, %arg4: memref<1x8x128xf32, #tpu.memory_space<vmem>>, %arg5: memref<64x128xf32, #tpu.memory_space<vmem>>, %arg6: memref<128x256xf32, #tpu.memory_space<vmem>>, %arg7: memref<1x256xf32, #tpu.memory_space<vmem>>, %arg8: memref<1x16x8x256xf32, #tpu.memory_space<vmem>>, %arg9: memref<128x128xf32, #tpu.memory_space<vmem>>) attributes {dimension_semantics = [#tpu.dimension_semantics<parallel>, #tpu.dimension_semantics<parallel>, #tpu.dimension_semantics<arbitrary>], iteration_bounds = array<i64: 2, 1, 1>, scalar_prefetch = 0 : i64, scratch_operands = 1 : i64, tpu.core_type = #tpu.core_type<tc>, window_params = [{transform_indices = @transform_0, window_bounds = array<i64: 1, 16, 64>}, {transform_indices = @transform_1, window_bounds = array<i64: 1, 8, 128>}, {pipeline_mode = #tpu.pipeline_mode<synchronous>, transform_indices = @transform_2, window_bounds = array<i64: 64, 128>}, {transform_indices = @transform_3, window_bounds = array<i64: 128, 256>}, {transform_indices = @transform_4, window_bounds = array<i64: 1, 256>}, {transform_indices = @transform_5, window_bounds = array<i64: 1, 16, 8, 256>}]} {
    %c0_i32 = arith.constant 0 : i32
    %0 = arith.cmpi eq, %arg2, %c0_i32 : i32
    %1 = arith.extui %0 : i1 to i32
    %c0_i32_0 = arith.constant 0 : i32
    %2 = arith.cmpi ne, %1, %c0_i32_0 : i32
    scf.if %2 {
      %c0_10 = arith.constant 0 : index
      %c0_11 = arith.constant 0 : index
      %c0_12 = arith.constant 0 : index
      %13 = vector.load %arg3[%c0_10, %c0_11, %c0_12] : memref<1x16x64xf32, #tpu.memory_space<vmem>>, vector<1x16x64xf32>
      %14 = vector.shape_cast %13 : vector<1x16x64xf32> to vector<16x64xf32>
      %c0_13 = arith.constant 0 : index
      %c0_14 = arith.constant 0 : index
      %c0_15 = arith.constant 0 : index
      %15 = vector.load %arg4[%c0_13, %c0_14, %c0_15] : memref<1x8x128xf32, #tpu.memory_space<vmem>>, vector<1x8x128xf32>
      %16 = vector.shape_cast %15 : vector<1x8x128xf32> to vector<8x128xf32>
      %c0_16 = arith.constant 0 : index
      %c0_17 = arith.constant 0 : index
      %17 = vector.load %arg5[%c0_16, %c0_17] : memref<64x128xf32, #tpu.memory_space<vmem>>, vector<64x128xf32>
      %cst_18 = arith.constant dense<0.000000e+00> : vector<16x128xf32>
      %18 = tpu.matmul %14, %17, %cst_18 {dimension_numbers = #tpu.dot_dimension_numbers<[1], [0], [0], [1], [0, 0, 1, 1], [], []>} : vector<16x64xf32>, vector<64x128xf32>, vector<16x128xf32> -> vector<16x128xf32>
      %19 = vector.shape_cast %18 : vector<16x128xf32> to vector<16x1x128xf32>
      %20 = vector.shape_cast %16 : vector<8x128xf32> to vector<1x8x128xf32>
      %21 = vector.broadcast %19 : vector<16x1x128xf32> to vector<16x8x128xf32>
      %22 = vector.broadcast %20 : vector<1x8x128xf32> to vector<16x8x128xf32>
      %23 = arith.addf %21, %22 : vector<16x8x128xf32>
      %24 = math.tanh %23 : vector<16x8x128xf32>
      %25 = vector.shape_cast %24 : vector<16x8x128xf32> to vector<128x128xf32>
      %c0_19 = arith.constant 0 : index
      %c0_20 = arith.constant 0 : index
      %26 = vector.load %arg9[%c0_19, %c0_20] : memref<128x128xf32, #tpu.memory_space<vmem>>, vector<128x128xf32>
      tpu.vector_store %arg9[%c0_19, %c0_20], %25 {strides = array<i32>} : memref<128x128xf32, #tpu.memory_space<vmem>>, vector<128x128xf32>,
    } else {
    }
    %c0 = arith.constant 0 : index
    %c0_1 = arith.constant 0 : index
    %3 = vector.load %arg9[%c0, %c0_1] : memref<128x128xf32, #tpu.memory_space<vmem>>, vector<128x128xf32>
    %c0_2 = arith.constant 0 : index
    %c0_3 = arith.constant 0 : index
    %4 = vector.load %arg6[%c0_2, %c0_3] : memref<128x256xf32, #tpu.memory_space<vmem>>, vector<128x256xf32>
    %cst = arith.constant dense<0.000000e+00> : vector<128x256xf32>
    %5 = tpu.matmul %3, %4, %cst {dimension_numbers = #tpu.dot_dimension_numbers<[1], [0], [0], [1], [0, 0, 1, 1], [], []>} : vector<128x128xf32>, vector<128x256xf32>, vector<128x256xf32> -> vector<128x256xf32>
    %c0_4 = arith.constant 0 : index
    %c0_5 = arith.constant 0 : index
    %6 = vector.load %arg7[%c0_4, %c0_5] : memref<1x256xf32, #tpu.memory_space<vmem>>, vector<1x256xf32>
    %7 = vector.broadcast %6 : vector<1x256xf32> to vector<128x256xf32>
    %8 = arith.addf %5, %7 : vector<128x256xf32>
    %9 = vector.shape_cast %8 : vector<128x256xf32> to vector<16x8x256xf32>
    %c0_6 = arith.constant 0 : index
    %c0_7 = arith.constant 0 : index
    %c0_8 = arith.constant 0 : index
    %c0_9 = arith.constant 0 : index
    %10 = vector.load %arg8[%c0_6, %c0_7, %c0_8, %c0_9] : memref<1x16x8x256xf32, #tpu.memory_space<vmem>>, vector<1x16x8x256xf32>
    %11 = vector.shape_cast %10 : vector<1x16x8x256xf32> to vector<16x8x256xf32>
    %12 = vector.shape_cast %9 : vector<16x8x256xf32> to vector<1x16x8x256xf32>
    tpu.vector_store %arg8[%c0_6, %c0_7, %c0_8, %c0_9], %12 {strides = array<i32>} : memref<1x16x8x256xf32, #tpu.memory_space<vmem>>, vector<1x16x8x256xf32>,
    return
  }
  func.func @transform_0(%arg0: i32, %arg1: i32, %arg2: i32) -> (i32, i32, i32) {
    %c0_i32 = arith.constant 0 : i32
    %c0_i32_0 = arith.constant 0 : i32
    return %arg0, %arg1, %c0_i32 : i32, i32, i32
  }
  func.func @transform_1(%arg0: i32, %arg1: i32, %arg2: i32) -> (i32, i32, i32) {
    %c0_i32 = arith.constant 0 : i32
    %c0_i32_0 = arith.constant 0 : i32
    %c0_i32_1 = arith.constant 0 : i32
    return %arg0, %c0_i32, %c0_i32_0 : i32, i32, i32
  }
  func.func @transform_2(%arg0: i32, %arg1: i32, %arg2: i32) -> (i32, i32) {
    %c0_i32 = arith.constant 0 : i32
    %c0_i32_0 = arith.constant 0 : i32
    %c0_i32_1 = arith.constant 0 : i32
    return %c0_i32, %c0_i32_0 : i32, i32
  }
  func.func @transform_3(%arg0: i32, %arg1: i32, %arg2: i32) -> (i32, i32) {
    %c0_i32 = arith.constant 0 : i32
    %c0_i32_0 = arith.constant 0 : i32
    return %c0_i32, %arg2 : i32, i32
  }
  func.func @transform_4(%arg0: i32, %arg1: i32, %arg2: i32) -> (i32, i32) {
    %c0_i32 = arith.constant 0 : i32
    %c0_i32_0 = arith.constant 0 : i32
    return %c0_i32, %arg2 : i32, i32
  }
  func.func @transform_5(%arg0: i32, %arg1: i32, %arg2: i32) -> (i32, i32, i32, i32) {
    %c0_i32 = arith.constant 0 : i32
    %c0_i32_0 = arith.constant 0 : i32
    return %arg0, %arg1, %c0_i32, %arg2 : i32, i32, i32, i32
  }
}

</mosaic_0001>

<llo_original>
// kernel: tpu_custom_call.1
$region0: #{tpu_custom_call.1}
  #allocation0 [shape = 'u32[]', space=smem, size = 0x4, offset = 0x4, fixed_abs, tag = 'smem constant byte address 0x4 - core index']
  #allocation1 [shape = 'u32[72,128]{1,0:T(1,128)}', space=vmem, size = 0x9000, scoped, tag = 'internal scratch']
  #allocation2 [shape = 'f32[128,128]{1,0:T(8,128)}', space=vmem, size = 0x10000, scoped, tag = 'scratch operand']
  %s0 = inlined_call_operand.hbm [shape: f32[2,16,64], index: 0, kind: input, shape index: {}]
  %s1 = inlined_call_operand.hbm [shape: f32[2,8,128], index: 1, kind: input, shape index: {}]
  %s2 = inlined_call_operand.hbm [shape: f32[64,128], index: 2, kind: input, shape index: {}]
  %s3 = inlined_call_operand.hbm [shape: f32[128,256], index: 3, kind: input, shape index: {}]
  %s4 = inlined_call_operand.vmem [shape: f32[1,256], index: 4, kind: input, shape index: {}]
  %s5 = inlined_call_operand.hbm [shape: f32[2,16,8,256], index: 5, kind: output, shape index: {}]
  %s6 = sld [smem:[#allocation0]]
  $region73: #{tpu_custom_call.1} parent=0
    _
  %s8 = ssub.s32 1, %s6
  %s9 = scalar_select 0, %s8, %s6
  $region1: #{tpu_custom_call.1} parent=0
    #allocation3 [shape = 'u8[16384]{0}', space=vmem, size = 0x4000, scoped, tag = 'input window, operand 0']
    #allocation4 [shape = 's32[2]{0}', space=sflag, size = 0x8, scoped, tag = 'scoped memory for tpu_custom_call.1']
    #allocation5 [shape = 's32[2]{0}', space=sflag, size = 0x8, scoped, tag = 'scoped memory for tpu_custom_call.1']
    #allocation6 [shape = 'u8[8192]{0}', space=vmem, size = 0x2000, scoped, tag = 'input window, operand 1']
    #allocation7 [shape = 's32[2]{0}', space=sflag, size = 0x8, scoped, tag = 'scoped memory for tpu_custom_call.1']
    #allocation8 [shape = 'u8[32768]{0}', space=vmem, size = 0x8000, scoped, tag = 'input window, operand 2, single buffered']
    #allocation9 [shape = 'u8[131072]{0}', space=vmem, size = 0x20000, scoped, tag = 'input window, operand 3, single buffered']
    #allocation10 [shape = 's32[1]{0}', space=sflag, size = 0x4, scoped, tag = 'scoped memory for tpu_custom_call.1']
    #allocation11 [shape = 'u8[262144]{0}', space=vmem, size = 0x40000, scoped, tag = 'output window, operand 0']
    %10 = vsyncpa [#allocation4], 0
    %s11 = scalar_lea.sflag [#allocation4], 1
    %12 = vsyncpa %s11, 0
    %13 = vsyncpa [#allocation7], 0
    %s14 = scalar_lea.sflag [#allocation7], 1
    %15 = vsyncpa %s14, 0
    %16 = vsyncpa [#allocation10], 0
    %17 = vsyncpa [#allocation5], 0
    %s18 = scalar_lea.sflag [#allocation5], 1
    %19 = vsyncpa %s18, 0
    loop: start=0, step=1, limit=4
    $region2: #{tpu_custom_call.1} parent=1 // loop_pre_header
      _
    $region3: #{tpu_custom_call.1} parent=1 // loop_header
      %s21 = sphi 0, %s25
      %p22 = scmp.ge.s32.totalorder %s21, 4
      %s28 = sphi 0, %s47
      %s29 = sphi 0, %s43
      %s30 = sphi 0, %s39
      %s31 = sphi 0, %s28
      %s32 = sphi 0, %s29
      %s33 = sphi 0, %s30
      %s34 = sphi 0, %s31
      %s35 = sphi 0, %s32
      %s36 = sphi 0, %s33
      %s52 = sphi 0, %s54
      %s55 = sphi 0, %s52
      %s56 = sphi 0, %s55
      %s72 = sphi 0, %s56
      %s78 = sphi 0, %s80
      %s81 = sphi 0, %s78
      %s82 = sphi 0, %s81
      %s98 = sphi 0, %s82
      %s102 = sphi 0, %s102
      %s104 = sphi 0, %s102
      %s105 = sphi 0, %s104
      %s119 = sphi 0, %s105
      %s125 = sphi 0, %s127
      %s128 = sphi 0, %s125
      %s129 = sphi 0, %s128
      %s145 = sphi 0, %s129
      %s151 = sphi 0, %s153
      %s154 = sphi 0, %s151
      %s155 = sphi 0, %s154
      %s171 = sphi 0, %s155
      %s181 = sphi 0, %s183
      %s184 = sphi 0, %s181
      %s185 = sphi 0, %s184
      %s201 = sphi 0, %s185
    $region4: #{tpu_custom_call.1} parent=1 // loop_header_branch
      %24 = sbr.rel (%p22) target = $region8
    $region5: #{tpu_custom_call.1} parent=1 // loop_body
      %s26 = ssub.s32 %s21, 1
      %s27 = ssub.s32 %s21, 2
      %s37 = sadd.s32 1, %s30
      %p38 = scmp.ge.s32.totalorder %s37, 1
      %s39 = scalar_select %p38, 0, %s37
      %s40 = sadd.s32 1, %s29
      %s41 = scalar_select %p38, %s40, %s29
      %p42 = scmp.ge.s32.totalorder %s41, 1
      %s43 = scalar_select %p42, 0, %s41
      %s44 = sadd.s32 1, %s28
      %s45 = scalar_select %p42, %s44, %s28
      %p46 = scmp.ge.s32.totalorder %s45, 2
      %s47 = scalar_select %p46, 0, %s45
      %s48 = ssub.s32 %s28, %s47
      %s49 = ssub.s32 %s29, %s43
      %s50 = sor.u32 %s48, %s49
      %p51 = scmp.eq.s32.totalorder %s50, 0
      %s53 = sadd.s32 %s52, 1
      %s54 = scalar_select %p51, %s52, %s53
      %p57 = pneg %p51
      %p58 = scmp.eq.s32.totalorder %s21, 1
      %p59 = por %p57, %p58
      %p60 = scmp.ne.s32.totalorder %s52, %s55
      %p61 = scmp.eq.s32.totalorder %s21, 0
      %p62 = por %p60, %p61
      %p63 = scmp.ne.s32.totalorder %s52, %s55
      %p64 = scmp.eq.s32.totalorder %s26, 1
      %p65 = por %p63, %p64
      %p66 = scmp.ne.s32.totalorder %s55, %s56
      %p67 = scmp.eq.s32.totalorder %s26, 0
      %p68 = por %p66, %p67
      %p69 = scmp.ne.s32.totalorder %s55, %s56
      %p70 = scmp.eq.s32.totalorder %s27, 1
      %p71 = por %p69, %p70
      %p73 = scmp.ne.s32.totalorder %s56, %s72
      %p74 = scmp.eq.s32.totalorder %s27, 0
      %p75 = por %p73, %p74
      %s76 = ssub.s32 %s28, %s47
      %p77 = scmp.eq.s32.totalorder %s76, 0
      %s79 = sadd.s32 %s78, 1
      %s80 = scalar_select %p77, %s78, %s79
      %p83 = pneg %p77
      %p84 = scmp.eq.s32.totalorder %s21, 1
      %p85 = por %p83, %p84
      %p86 = scmp.ne.s32.totalorder %s78, %s81
      %p87 = scmp.eq.s32.totalorder %s21, 0
      %p88 = por %p86, %p87
      %p89 = scmp.ne.s32.totalorder %s78, %s81
      %p90 = scmp.eq.s32.totalorder %s26, 1
      %p91 = por %p89, %p90
      %p92 = scmp.ne.s32.totalorder %s81, %s82
      %p93 = scmp.eq.s32.totalorder %s26, 0
      %p94 = por %p92, %p93
      %p95 = scmp.ne.s32.totalorder %s81, %s82
      %p96 = scmp.eq.s32.totalorder %s27, 1
      %p97 = por %p95, %p96
      %p99 = scmp.ne.s32.totalorder %s82, %s98
      %p100 = scmp.eq.s32.totalorder %s27, 0
      %p101 = por %p99, %p100
      %s103 = sadd.s32 %s102, 1
      %p106 = scmp.eq.s32.totalorder %s21, 1
      %p107 = scmp.ne.s32.totalorder %s102, %s104
      %p108 = scmp.eq.s32.totalorder %s21, 0
      %p109 = por %p107, %p108
      %p110 = scmp.ne.s32.totalorder %s102, %s104
      %p111 = scmp.eq.s32.totalorder %s26, 1
      %p112 = por %p110, %p111
      %p113 = scmp.ne.s32.totalorder %s104, %s105
      %p114 = scmp.eq.s32.totalorder %s26, 0
      %p115 = por %p113, %p114
      %p116 = scmp.ne.s32.totalorder %s104, %s105
      %p117 = scmp.eq.s32.totalorder %s27, 1
      %p118 = por %p116, %p117
      %p120 = scmp.ne.s32.totalorder %s105, %s119
      %p121 = scmp.eq.s32.totalorder %s27, 0
      %p122 = por %p120, %p121
      %s123 = ssub.s32 %s30, %s39
      %p124 = scmp.eq.s32.totalorder %s123, 0
      %s126 = sadd.s32 %s125, 1
      %s127 = scalar_select %p124, %s125, %s126
      %p130 = pneg %p124
      %p131 = scmp.eq.s32.totalorder %s21, 1
      %p132 = por %p130, %p131
      %p133 = scmp.ne.s32.totalorder %s125, %s128
      %p134 = scmp.eq.s32.totalorder %s21, 0
      %p135 = por %p133, %p134
      %p136 = scmp.ne.s32.totalorder %s125, %s128
      %p137 = scmp.eq.s32.totalorder %s26, 1
      %p138 = por %p136, %p137
      %p139 = scmp.ne.s32.totalorder %s128, %s129
      %p140 = scmp.eq.s32.totalorder %s26, 0
      %p141 = por %p139, %p140
      %p142 = scmp.ne.s32.totalorder %s128, %s129
      %p143 = scmp.eq.s32.totalorder %s27, 1
      %p144 = por %p142, %p143
      %p146 = scmp.ne.s32.totalorder %s129, %s145
      %p147 = scmp.eq.s32.totalorder %s27, 0
      %p148 = por %p146, %p147
      %s149 = ssub.s32 %s30, %s39
      %p150 = scmp.eq.s32.totalorder %s149, 0
      %s152 = sadd.s32 %s151, 1
      %s153 = scalar_select %p150, %s151, %s152
      %p156 = pneg %p150
      %p157 = scmp.eq.s32.totalorder %s21, 1
      %p158 = por %p156, %p157
      %p159 = scmp.ne.s32.totalorder %s151, %s154
      %p160 = scmp.eq.s32.totalorder %s21, 0
      %p161 = por %p159, %p160
      %p162 = scmp.ne.s32.totalorder %s151, %s154
      %p163 = scmp.eq.s32.totalorder %s26, 1
      %p164 = por %p162, %p163
      %p165 = scmp.ne.s32.totalorder %s154, %s155
      %p166 = scmp.eq.s32.totalorder %s26, 0
      %p167 = por %p165, %p166
      %p168 = scmp.ne.s32.totalorder %s154, %s155
      %p169 = scmp.eq.s32.totalorder %s27, 1
      %p170 = por %p168, %p169
      %p172 = scmp.ne.s32.totalorder %s155, %s171
      %p173 = scmp.eq.s32.totalorder %s27, 0
      %p174 = por %p172, %p173
      %s175 = ssub.s32 %s28, %s47
      %s176 = ssub.s32 %s29, %s43
      %s177 = sor.u32 %s175, %s176
      %s178 = ssub.s32 %s30, %s39
      %s179 = sor.u32 %s177, %s178
      %p180 = scmp.eq.s32.totalorder %s179, 0
      %s182 = sadd.s32 %s181, 1
      %s183 = scalar_select %p180, %s181, %s182
      %p186 = pneg %p180
      %p187 = scmp.eq.s32.totalorder %s21, 1
      %p188 = por %p186, %p187
      %p189 = scmp.ne.s32.totalorder %s181, %s184
      %p190 = scmp.eq.s32.totalorder %s21, 0
      %p191 = por %p189, %p190
      %p192 = scmp.ne.s32.totalorder %s181, %s184
      %p193 = scmp.eq.s32.totalorder %s26, 1
      %p194 = por %p192, %p193
      %p195 = scmp.ne.s32.totalorder %s184, %s185
      %p196 = scmp.eq.s32.totalorder %s26, 0
      %p197 = por %p195, %p196
      %p198 = scmp.ne.s32.totalorder %s184, %s185
      %p199 = scmp.eq.s32.totalorder %s27, 1
      %p200 = por %p198, %p199
      %p202 = scmp.ne.s32.totalorder %s185, %s201
      %p203 = scmp.eq.s32.totalorder %s27, 0
      %p204 = por %p202, %p203
      %p205 = scmp.le.s32.totalorder 1, %s21
      %p206 = scmp.lt.s32.totalorder %s21, 3
      %p207 = pnand %p205, %p206
      %p208 = pneg %p207
      // Predicated region
      $region9: #{tpu_custom_call.1} parent=5 // pred_check
        _
      $region10: #{tpu_custom_call.1} parent=5 // pred_check_branch
        %210 = sbr.rel (%p207) target = $region12
      $region11: #{tpu_custom_call.1} parent=5 // pred_region
        %s211 = ssub.s32 %s21, 1
        // Predicated region
        $region13: #{tpu_custom_call.1} parent=11 // pred_check
          %p212 = pneg %p115
        $region14: #{tpu_custom_call.1} parent=11 // pred_check_branch
          %214 = sbr.rel (%p212) target = $region16
        $region15: #{tpu_custom_call.1} parent=11 // pred_region
          %216 = vsyncadd [#allocation7], 0
          %s217 = sshll.u32 %s2, 4
          %s218 = int_to_ptr.hbm [resolvable:$true] %s217
          %s219 = sshll.u32 [#allocation8], 4
          %s220 = int_to_ptr.vmem [resolvable:$true] %s219
          %225 = dma.hbm_to_vmem [thread:$0]  %s218, 1024, %s220, [#allocation7], 128, 128, 8
        $region16: #{tpu_custom_call.1} parent=11 // pred_fallthru
          _
        // Predicated region
        $region17: #{tpu_custom_call.1} parent=11 // pred_check
          %p226 = pneg %p141
        $region18: #{tpu_custom_call.1} parent=11 // pred_check_branch
          %228 = sbr.rel (%p226) target = $region20
        $region19: #{tpu_custom_call.1} parent=11 // pred_region
          %s229 = smul.u32 2, %s33
          %231 = vsyncadd [#allocation10], 0
          %s232 = smul.addr %s229, 8
          %s233 = scalar_lea.hbm %s3, %s232
          %s234 = sshll.u32 %s233, 4
          %s235 = int_to_ptr.hbm [resolvable:$true] %s234
          %s236 = sshll.u32 [#allocation9], 4
          %s237 = int_to_ptr.vmem [resolvable:$true] %s236
          %242 = dma.hbm_to_vmem [thread:$0]  %s235, 4096, %s237, [#allocation10], 256, 256, 16
        $region20: #{tpu_custom_call.1} parent=11 // pred_fallthru
          _
        // Predicated region
        $region21: #{tpu_custom_call.1} parent=11 // pred_check
          %p243 = pneg %p167
        $region22: #{tpu_custom_call.1} parent=11 // pred_check_branch
          %245 = sbr.rel (%p243) target = $region24
        $region23: #{tpu_custom_call.1} parent=11 // pred_region
          %s246 = smul.u32 2, %s33
          %p247 = scmp.lt.s32.totalorder %s246, 1
          %s248 = scalar_select %p247, %s246, 1
          %s249 = scalar_lea.vmem %s4, %s248
          %s250 = smul.u32 2, %s33
        $region24: #{tpu_custom_call.1} parent=11 // pred_fallthru
          _
      $region12: #{tpu_custom_call.1} parent=5 // pred_fallthru
        _
      %p251 = scmp.lt.s32.totalorder %s21, 2
      // Predicated region
      $region25: #{tpu_custom_call.1} parent=5 // pred_check
        %p252 = pneg %p251
      $region26: #{tpu_custom_call.1} parent=5 // pred_check_branch
        %254 = sbr.rel (%p252) target = $region28
      $region27: #{tpu_custom_call.1} parent=5 // pred_region
        // Predicated region
        $region29: #{tpu_custom_call.1} parent=27 // pred_check
          %p255 = pneg %p62
        $region30: #{tpu_custom_call.1} parent=27 // pred_check_branch
          %257 = sbr.rel (%p255) target = $region32
        $region31: #{tpu_custom_call.1} parent=27 // pred_region
          %s258 = sand.u32 %s52, 1
          %s259 = scalar_lea.sflag [#allocation4], %s258
          %s260 = sand.u32 %s52, 1
          %s261 = smul.addr %s260, 16
          %s262 = scalar_lea.vmem [#allocation3], %s261
          %s263 = smul.u32 2, %s29
          %265 = vsyncadd %s259, 0
          %s266 = smul.addr %s28, 2
          %s267 = sadd.s32 %s263, %s266
          %s268 = smul.addr %s267, 8
          %s269 = scalar_lea.hbm %s0, %s268
          %s270 = sshll.u32 %s269, 4
          %s271 = int_to_ptr.hbm [resolvable:$true] %s270
          %s272 = sshll.u32 %s262, 4
          %s273 = int_to_ptr.vmem [resolvable:$true] %s272
          %278 = dma.hbm_to_vmem [thread:$0]  %s271, 256, %s273, %s259, 128, 128, 8
        $region32: #{tpu_custom_call.1} parent=27 // pred_fallthru
          _
        // Predicated region
        $region33: #{tpu_custom_call.1} parent=27 // pred_check
          %p279 = pneg %p88
        $region34: #{tpu_custom_call.1} parent=27 // pred_check_branch
          %281 = sbr.rel (%p279) target = $region36
        $region35: #{tpu_custom_call.1} parent=27 // pred_region
          %s282 = sand.u32 %s21, 1
          %s283 = scalar_lea.sflag [#allocation7], %s282
          %s284 = sand.u32 %s78, 1
          %s285 = smul.addr %s284, 8
          %s286 = scalar_lea.vmem [#allocation6], %s285
          %288 = vsyncadd %s283, 0
          %s289 = smul.addr %s28, 8
          %s290 = scalar_lea.hbm %s1, %s289
          %s292 = sshll.u32 %s290, 4
          %s293 = int_to_ptr.hbm [resolvable:$true] %s292
          %s294 = sshll.u32 %s286, 4
          %s295 = int_to_ptr.vmem [resolvable:$true] %s294
          %297 = dma.hbm_to_vmem [thread:$0]  %s293, 128, %s295, %s283
        $region36: #{tpu_custom_call.1} parent=27 // pred_fallthru
          _
      $region28: #{tpu_custom_call.1} parent=5 // pred_fallthru
        _
      %p298 = scmp.le.s32.totalorder 1, %s21
      %p299 = scmp.lt.s32.totalorder %s21, 3
      %p300 = pnand %p298, %p299
      %p301 = pneg %p300
      // Predicated region
      $region37: #{tpu_custom_call.1} parent=5 // pred_check
        _
      $region38: #{tpu_custom_call.1} parent=5 // pred_check_branch
        %303 = sbr.rel (%p300) target = $region40
      $region39: #{tpu_custom_call.1} parent=5 // pred_region
        %s304 = ssub.s32 %s21, 1
        %s305 = sand.u32 %s55, 1
        %s306 = scalar_lea.sflag [#allocation4], %s305
        %s307 = sand.u32 %s55, 1
        %s308 = smul.addr %s307, 16
        %s309 = scalar_lea.vmem [#allocation3], %s308
        // Predicated region
        $region41: #{tpu_custom_call.1} parent=39 // pred_check
          %p310 = pneg %p68
        $region42: #{tpu_custom_call.1} parent=39 // pred_check_branch
          %312 = sbr.rel (%p310) target = $region44
        $region43: #{tpu_custom_call.1} parent=39 // pred_region
          %314 = dma.done %s306, 256
        $region44: #{tpu_custom_call.1} parent=39 // pred_fallthru
          _
        %s315 = sand.u32 %s26, 1
        %s316 = scalar_lea.sflag [#allocation7], %s315
        %s317 = sand.u32 %s81, 1
        %s318 = smul.addr %s317, 8
        %s319 = scalar_lea.vmem [#allocation6], %s318
        // Predicated region
        $region45: #{tpu_custom_call.1} parent=39 // pred_check
          %p320 = pneg %p94
        $region46: #{tpu_custom_call.1} parent=39 // pred_check_branch
          %322 = sbr.rel (%p320) target = $region48
        $region47: #{tpu_custom_call.1} parent=39 // pred_region
          %324 = dma.done %s316, 128
        $region48: #{tpu_custom_call.1} parent=39 // pred_fallthru
          _
        // Predicated region
        $region49: #{tpu_custom_call.1} parent=39 // pred_check
          %p325 = pneg %p115
        $region50: #{tpu_custom_call.1} parent=39 // pred_check_branch
          %327 = sbr.rel (%p325) target = $region52
        $region51: #{tpu_custom_call.1} parent=39 // pred_region
          %329 = dma.done [#allocation7], 1024
        $region52: #{tpu_custom_call.1} parent=39 // pred_fallthru
          _
        // Predicated region
        $region53: #{tpu_custom_call.1} parent=39 // pred_check
          %p330 = pneg %p141
        $region54: #{tpu_custom_call.1} parent=39 // pred_check_branch
          %332 = sbr.rel (%p330) target = $region56
        $region55: #{tpu_custom_call.1} parent=39 // pred_region
          %334 = dma.done [#allocation10], 4096
        $region56: #{tpu_custom_call.1} parent=39 // pred_fallthru
          _
        %s335 = sand.u32 %s55, 1
        %s336 = scalar_lea.sflag [#allocation4], %s335
        %s337 = sand.u32 %s55, 1
        %s338 = smul.addr %s337, 16
        %s339 = scalar_lea.vmem [#allocation3], %s338
        %p340 = pneg %p68
        %p341 = pneg %p65
        %s342 = sand.u32 %s26, 1
        %s343 = scalar_lea.sflag [#allocation7], %s342
        %s344 = sand.u32 %s81, 1
        %s345 = smul.addr %s344, 8
        %s346 = scalar_lea.vmem [#allocation6], %s345
        %p347 = pneg %p94
        %p348 = pneg %p91
        %p349 = pneg %p115
        %p350 = pneg %p112
        %p351 = pneg %p141
        %p352 = pneg %p138
        %s353 = smul.u32 2, %s33
        %p354 = scmp.lt.s32.totalorder %s353, 1
        %s355 = scalar_select %p354, %s353, 1
        %s356 = scalar_lea.vmem %s4, %s355
        %p357 = pneg %p167
        %p358 = pneg %p164
        %p359 = pneg %p197
        %p360 = pneg %p194
        %s361 = sand.u32 %s184, 1
        %s362 = scalar_lea.sflag [#allocation5], %s361
        %s363 = sand.u32 %s184, 1
        %s364 = smul.addr %s363, 256
        %s365 = scalar_lea.vmem [#allocation11], %s364
        %s366 = smul.u32 2, %s32
        %s367 = smul.u32 2, %s33
        %s368 = smul.u32 2, %s33
        %p369 = scmp.lt.s32.totalorder %s368, 1
        %s370 = scalar_select %p369, %s368, 1
        %s371 = scalar_lea.vmem %s4, %s370
        %s372 = smul.u32 2, %s33
        %s373 = smul.u32 16, %s32
        %s374 = smul.u32 2, %s33
        %p375 = scmp.eq.s32.totalorder %s33, 0
        // Predicated region
        $region57: #{tpu_custom_call.1} parent=39 // pred_check
          %p376 = pneg %p375
        $region58: #{tpu_custom_call.1} parent=39 // pred_check_branch
          %378 = sbr.rel (%p376) target = $region60
        $region59: #{tpu_custom_call.1} parent=39 // pred_region
          %v379 = vld [vmem:[%s309] sm:$0xff]
          %v380 = vld [vmem:[%s309 + $0x8] sm:$0xff]
          %v381 = vld [vmem:[%s319] sm:$0xff]
          %v382 = vld [vmem:[#allocation8] sm:$0xff]
          %v383 = vld [vmem:[#allocation8 + $0x8] sm:$0xff]
          %v384 = vld [vmem:[#allocation8 + $0x10] sm:$0xff]
          %v385 = vld [vmem:[#allocation8 + $0x18] sm:$0xff]
          %v386 = vld [vmem:[#allocation8 + $0x20] sm:$0xff]
          %v387 = vld [vmem:[#allocation8 + $0x28] sm:$0xff]
          %v388 = vld [vmem:[#allocation8 + $0x30] sm:$0xff]
          %v389 = vld [vmem:[#allocation8 + $0x38] sm:$0xff]
          %vm390 = vcmask 523264
          %v392 = vsel %vm390, %v379, 0
          %v395 = vsel %vm390, %v380, 0
          %397 = vmatpush.msra.mxu0 0.0
          %398 = vmatpush.msra.mxu0 0.0
          %399 = vmatpush.msra.mxu0 0.0
          %400 = vmatpush.msra.mxu0 0.0
          %401 = vmatpush.msra.mxu0 0.0
          %402 = vmatpush.msra.mxu0 0.0
          %403 = vmatpush.msra.mxu0 0.0
          %404 = vmatpush.msra.mxu0 0.0
          %405 = vmatpush.msra.mxu0 %v389
          %406 = vmatpush.msra.mxu0 %v388
          %407 = vmatpush.msra.mxu0 %v387
          %408 = vmatpush.msra.mxu0 %v386
          %409 = vmatpush.msra.mxu0 %v385
          %410 = vmatpush.msra.mxu0 %v384
          %411 = vmatpush.msra.mxu0 %v383
          %412 = vmatpush.msra.mxu0 %v382
          %413 = vmatmul.f32.gmra.mxu0 %v392
          %v414 = vpop.f32.mrf.mxu0
          %v415 = vadd.f32 0.0, %v414
          %416 = vmatmul.f32.gmra.mxu0 %v395
          %v417 = vpop.f32.mrf.mxu0
          %v418 = vadd.f32 0.0, %v417
          %419 = vdwg.mxu0
          %v422 = vrot.slane %v415, 1
          %v423 = vrot.slane %v415, 2
          %v424 = vrot.slane %v415, 3
          %v425 = vrot.slane %v415, 4
          %v426 = vrot.slane %v415, 5
          %v427 = vrot.slane %v415, 6
          %v428 = vrot.slane %v415, 7
          %v429 = vrot.slane %v418, 1
          %v430 = vrot.slane %v418, 2
          %v431 = vrot.slane %v418, 3
          %v432 = vrot.slane %v418, 4
          %v433 = vrot.slane %v418, 5
          %v434 = vrot.slane %v418, 6
          %v435 = vrot.slane %v418, 7
          %v436 = vperm.slane %v415, 0
          %v437 = vperm.slane %v422, 0
          %v438 = vperm.slane %v423, 0
          %v439 = vperm.slane %v424, 0
          %v440 = vperm.slane %v425, 0
          %v441 = vperm.slane %v426, 0
          %v442 = vperm.slane %v427, 0
          %v443 = vperm.slane %v428, 0
          %v444 = vperm.slane %v418, 0
          %v445 = vperm.slane %v429, 0
          %v446 = vperm.slane %v430, 0
          %v447 = vperm.slane %v431, 0
          %v448 = vperm.slane %v432, 0
          %v449 = vperm.slane %v433, 0
          %v450 = vperm.slane %v434, 0
          %v451 = vperm.slane %v435, 0
          %v468 = vadd.f32 %v436, %v381
          %v469 = vadd.f32 %v437, %v381
          %v470 = vadd.f32 %v438, %v381
          %v471 = vadd.f32 %v439, %v381
          %v472 = vadd.f32 %v440, %v381
          %v473 = vadd.f32 %v441, %v381
          %v474 = vadd.f32 %v442, %v381
          %v475 = vadd.f32 %v443, %v381
          %v476 = vadd.f32 %v444, %v381
          %v477 = vadd.f32 %v445, %v381
          %v478 = vadd.f32 %v446, %v381
          %v479 = vadd.f32 %v447, %v381
          %v480 = vadd.f32 %v448, %v381
          %v481 = vadd.f32 %v449, %v381
          %v482 = vadd.f32 %v450, %v381
          %v483 = vadd.f32 %v451, %v381
          %v484 = vtanh.pop %v468
          %v485 = vtanh.pop %v469
          %v486 = vtanh.pop %v470
          %v487 = vtanh.pop %v471
          %v488 = vtanh.pop %v472
          %v489 = vtanh.pop %v473
          %v490 = vtanh.pop %v474
          %v491 = vtanh.pop %v475
          %v492 = vtanh.pop %v476
          %v493 = vtanh.pop %v477
          %v494 = vtanh.pop %v478
          %v495 = vtanh.pop %v479
          %v496 = vtanh.pop %v480
          %v497 = vtanh.pop %v481
          %v498 = vtanh.pop %v482
          %v499 = vtanh.pop %v483
          %500 = vst [vmem:[#allocation2] sm:$0xff] %v484
          %501 = vst [vmem:[#allocation2 + $0x8] sm:$0xff] %v485
          %502 = vst [vmem:[#allocation2 + $0x10] sm:$0xff] %v486
          %503 = vst [vmem:[#allocation2 + $0x18] sm:$0xff] %v487
          %504 = vst [vmem:[#allocation2 + $0x20] sm:$0xff] %v488
          %505 = vst [vmem:[#allocation2 + $0x28] sm:$0xff] %v489
          %506 = vst [vmem:[#allocation2 + $0x30] sm:$0xff] %v490
          %507 = vst [vmem:[#allocation2 + $0x38] sm:$0xff] %v491
          %508 = vst [vmem:[#allocation2 + $0x40] sm:$0xff] %v492
          %509 = vst [vmem:[#allocation2 + $0x48] sm:$0xff] %v493
          %510 = vst [vmem:[#allocation2 + $0x50] sm:$0xff] %v494
          %511 = vst [vmem:[#allocation2 + $0x58] sm:$0xff] %v495
          %512 = vst [vmem:[#allocation2 + $0x60] sm:$0xff] %v496
          %513 = vst [vmem:[#allocation2 + $0x68] sm:$0xff] %v497
          %514 = vst [vmem:[#allocation2 + $0x70] sm:$0xff] %v498
          %515 = vst [vmem:[#allocation2 + $0x78] sm:$0xff] %v499
        $region60: #{tpu_custom_call.1} parent=39 // pred_fallthru
          _
        %v516 = vld [vmem:[#allocation2] sm:$0xff]
        %v517 = vld [vmem:[#allocation2 + $0x8] sm:$0xff]
        %v518 = vld [vmem:[#allocation2 + $0x10] sm:$0xff]
        %v519 = vld [vmem:[#allocation2 + $0x18] sm:$0xff]
        %v520 = vld [vmem:[#allocation2 + $0x20] sm:$0xff]
        %v521 = vld [vmem:[#allocation2 + $0x28] sm:$0xff]
        %v522 = vld [vmem:[#allocation2 + $0x30] sm:$0xff]
        %v523 = vld [vmem:[#allocation2 + $0x38] sm:$0xff]
        %v524 = vld [vmem:[#allocation2 + $0x40] sm:$0xff]
        %v525 = vld [vmem:[#allocation2 + $0x48] sm:$0xff]
        %v526 = vld [vmem:[#allocation2 + $0x50] sm:$0xff]
        %v527 = vld [vmem:[#allocation2 + $0x58] sm:$0xff]
        %v528 = vld [vmem:[#allocation2 + $0x60] sm:$0xff]
        %v529 = vld [vmem:[#allocation2 + $0x68] sm:$0xff]
        %v530 = vld [vmem:[#allocation2 + $0x70] sm:$0xff]
        %v531 = vld [vmem:[#allocation2 + $0x78] sm:$0xff]
        %v532 = vld [vmem:[#allocation9] sm:$0xff]
        %v533 = vld [vmem:[#allocation9 + $0x8] sm:$0xff]
        %v534 = vld [vmem:[#allocation9 + $0x10] sm:$0xff]
        %v535 = vld [vmem:[#allocation9 + $0x18] sm:$0xff]
        %v536 = vld [vmem:[#allocation9 + $0x20] sm:$0xff]
        %v537 = vld [vmem:[#allocation9 + $0x28] sm:$0xff]
        %v538 = vld [vmem:[#allocation9 + $0x30] sm:$0xff]
        %v539 = vld [vmem:[#allocation9 + $0x38] sm:$0xff]
        %v540 = vld [vmem:[#allocation9 + $0x40] sm:$0xff]
        %v541 = vld [vmem:[#allocation9 + $0x48] sm:$0xff]
        %v542 = vld [vmem:[#allocation9 + $0x50] sm:$0xff]
        %v543 = vld [vmem:[#allocation9 + $0x58] sm:$0xff]
        %v544 = vld [vmem:[#allocation9 + $0x60] sm:$0xff]
        %v545 = vld [vmem:[#allocation9 + $0x68] sm:$0xff]
        %v546 = vld [vmem:[#allocation9 + $0x70] sm:$0xff]
        %v547 = vld [vmem:[#allocation9 + $0x78] sm:$0xff]
        %v548 = vld [vmem:[#allocation9 + $0x80] sm:$0xff]
        %v549 = vld [vmem:[#allocation9 + $0x88] sm:$0xff]
        %v550 = vld [vmem:[#allocation9 + $0x90] sm:$0xff]
        %v551 = vld [vmem:[#allocation9 + $0x98] sm:$0xff]
        %v552 = vld [vmem:[#allocation9 + $0xa0] sm:$0xff]
        %v553 = vld [vmem:[#allocation9 + $0xa8] sm:$0xff]
        %v554 = vld [vmem:[#allocation9 + $0xb0] sm:$0xff]
        %v555 = vld [vmem:[#allocation9 + $0xb8] sm:$0xff]
        %v556 = vld [vmem:[#allocation9 + $0xc0] sm:$0xff]
        %v557 = vld [vmem:[#allocation9 + $0xc8] sm:$0xff]
        %v558 = vld [vmem:[#allocation9 + $0xd0] sm:$0xff]
        %v559 = vld [vmem:[#allocation9 + $0xd8] sm:$0xff]
        %v560 = vld [vmem:[#allocation9 + $0xe0] sm:$0xff]
        %v561 = vld [vmem:[#allocation9 + $0xe8] sm:$0xff]
        %v562 = vld [vmem:[#allocation9 + $0xf0] sm:$0xff]
        %v563 = vld [vmem:[#allocation9 + $0xf8] sm:$0xff]
        %v564 = vld [vmem:[%s371] sm:$0x3]
        %v566 = vperm.slane %v564, 0
        %v567 = vperm.slane %v564, 1
        %570 = vmatpush.msra.mxu0 %v562
        %571 = vmatpush.msra.mxu0 %v560
        %572 = vmatpush.msra.mxu0 %v558
        %573 = vmatpush.msra.mxu0 %v556
        %574 = vmatpush.msra.mxu0 %v554
        %575 = vmatpush.msra.mxu0 %v552
        %576 = vmatpush.msra.mxu0 %v550
        %577 = vmatpush.msra.mxu0 %v548
        %578 = vmatpush.msra.mxu0 %v546
        %579 = vmatpush.msra.mxu0 %v544
        %580 = vmatpush.msra.mxu0 %v542
        %581 = vmatpush.msra.mxu0 %v540
        %582 = vmatpush.msra.mxu0 %v538
        %583 = vmatpush.msra.mxu0 %v536
        %584 = vmatpush.msra.mxu0 %v534
        %585 = vmatpush.msra.mxu0 %v532
        %586 = vmatmul.f32.gmra.mxu0 %v516
        %v587 = vpop.f32.mrf.mxu0
        %v588 = vadd.f32 %v566, %v587
        %589 = vmatmul.f32.gmra.mxu0 %v517
        %v590 = vpop.f32.mrf.mxu0
        %v591 = vadd.f32 %v566, %v590
        %592 = vmatmul.f32.gmra.mxu0 %v518
        %v593 = vpop.f32.mrf.mxu0
        %v594 = vadd.f32 %v566, %v593
        %595 = vmatmul.f32.gmra.mxu0 %v519
        %v596 = vpop.f32.mrf.mxu0
        %v597 = vadd.f32 %v566, %v596
        %598 = vmatmul.f32.gmra.mxu0 %v520
        %v599 = vpop.f32.mrf.mxu0
        %v600 = vadd.f32 %v566, %v599
        %601 = vmatmul.f32.gmra.mxu0 %v521
        %v602 = vpop.f32.mrf.mxu0
        %v603 = vadd.f32 %v566, %v602
        %604 = vmatmul.f32.gmra.mxu0 %v522
        %v605 = vpop.f32.mrf.mxu0
        %v606 = vadd.f32 %v566, %v605
        %607 = vmatmul.f32.gmra.mxu0 %v523
        %v608 = vpop.f32.mrf.mxu0
        %v609 = vadd.f32 %v566, %v608
        %610 = vmatmul.f32.gmra.mxu0 %v524
        %v611 = vpop.f32.mrf.mxu0
        %v612 = vadd.f32 %v566, %v611
        %613 = vmatmul.f32.gmra.mxu0 %v525
        %v614 = vpop.f32.mrf.mxu0
        %v615 = vadd.f32 %v566, %v614
        %616 = vmatmul.f32.gmra.mxu0 %v526
        %v617 = vpop.f32.mrf.mxu0
        %v618 = vadd.f32 %v566, %v617
        %619 = vmatmul.f32.gmra.mxu0 %v527
        %v620 = vpop.f32.mrf.mxu0
        %v621 = vadd.f32 %v566, %v620
        %622 = vmatmul.f32.gmra.mxu0 %v528
        %v623 = vpop.f32.mrf.mxu0
        %v624 = vadd.f32 %v566, %v623
        %625 = vmatmul.f32.gmra.mxu0 %v529
        %v626 = vpop.f32.mrf.mxu0
        %v627 = vadd.f32 %v566, %v626
        %628 = vmatmul.f32.gmra.mxu0 %v530
        %v629 = vpop.f32.mrf.mxu0
        %v630 = vadd.f32 %v566, %v629
        %631 = vmatmul.f32.gmra.mxu0 %v531
        %v632 = vpop.f32.mrf.mxu0
        %v633 = vadd.f32 %v566, %v632
        %634 = vdwg.mxu0
        %635 = vmatpush.msra.mxu0 %v563
        %636 = vmatpush.msra.mxu0 %v561
        %637 = vmatpush.msra.mxu0 %v559
        %638 = vmatpush.msra.mxu0 %v557
        %639 = vmatpush.msra.mxu0 %v555
        %640 = vmatpush.msra.mxu0 %v553
        %641 = vmatpush.msra.mxu0 %v551
        %642 = vmatpush.msra.mxu0 %v549
        %643 = vmatpush.msra.mxu0 %v547
        %644 = vmatpush.msra.mxu0 %v545
        %645 = vmatpush.msra.mxu0 %v543
        %646 = vmatpush.msra.mxu0 %v541
        %647 = vmatpush.msra.mxu0 %v539
        %648 = vmatpush.msra.mxu0 %v537
        %649 = vmatpush.msra.mxu0 %v535
        %650 = vmatpush.msra.mxu0 %v533
        %651 = vmatmul.f32.gmra.mxu0 %v516
        %v652 = vpop.f32.mrf.mxu0
        %v653 = vadd.f32 %v567, %v652
        %654 = vmatmul.f32.gmra.mxu0 %v517
        %v655 = vpop.f32.mrf.mxu0
        %v656 = vadd.f32 %v567, %v655
        %657 = vmatmul.f32.gmra.mxu0 %v518
        %v658 = vpop.f32.mrf.mxu0
        %v659 = vadd.f32 %v567, %v658
        %660 = vmatmul.f32.gmra.mxu0 %v519
        %v661 = vpop.f32.mrf.mxu0
        %v662 = vadd.f32 %v567, %v661
        %663 = vmatmul.f32.gmra.mxu0 %v520
        %v664 = vpop.f32.mrf.mxu0
        %v665 = vadd.f32 %v567, %v664
        %666 = vmatmul.f32.gmra.mxu0 %v521
        %v667 = vpop.f32.mrf.mxu0
        %v668 = vadd.f32 %v567, %v667
        %669 = vmatmul.f32.gmra.mxu0 %v522
        %v670 = vpop.f32.mrf.mxu0
        %v671 = vadd.f32 %v567, %v670
        %672 = vmatmul.f32.gmra.mxu0 %v523
        %v673 = vpop.f32.mrf.mxu0
        %v674 = vadd.f32 %v567, %v673
        %675 = vmatmul.f32.gmra.mxu0 %v524
        %v676 = vpop.f32.mrf.mxu0
        %v677 = vadd.f32 %v567, %v676
        %678 = vmatmul.f32.gmra.mxu0 %v525
        %v679 = vpop.f32.mrf.mxu0
        %v680 = vadd.f32 %v567, %v679
        %681 = vmatmul.f32.gmra.mxu0 %v526
        %v682 = vpop.f32.mrf.mxu0
        %v683 = vadd.f32 %v567, %v682
        %684 = vmatmul.f32.gmra.mxu0 %v527
        %v685 = vpop.f32.mrf.mxu0
        %v686 = vadd.f32 %v567, %v685
        %687 = vmatmul.f32.gmra.mxu0 %v528
        %v688 = vpop.f32.mrf.mxu0
        %v689 = vadd.f32 %v567, %v688
        %690 = vmatmul.f32.gmra.mxu0 %v529
        %v691 = vpop.f32.mrf.mxu0
        %v692 = vadd.f32 %v567, %v691
        %693 = vmatmul.f32.gmra.mxu0 %v530
        %v694 = vpop.f32.mrf.mxu0
        %v695 = vadd.f32 %v567, %v694
        %696 = vmatmul.f32.gmra.mxu0 %v531
        %v697 = vpop.f32.mrf.mxu0
        %v698 = vadd.f32 %v567, %v697
        %699 = vdwg.mxu0
        %700 = vst [vmem:[%s365] sm:$0xff] %v588
        %701 = vst [vmem:[%s365 + $0x8] sm:$0xff] %v653
        %702 = vst [vmem:[%s365 + $0x10] sm:$0xff] %v591
        %703 = vst [vmem:[%s365 + $0x18] sm:$0xff] %v656
        %704 = vst [vmem:[%s365 + $0x20] sm:$0xff] %v594
        %705 = vst [vmem:[%s365 + $0x28] sm:$0xff] %v659
        %706 = vst [vmem:[%s365 + $0x30] sm:$0xff] %v597
        %707 = vst [vmem:[%s365 + $0x38] sm:$0xff] %v662
        %708 = vst [vmem:[%s365 + $0x40] sm:$0xff] %v600
        %709 = vst [vmem:[%s365 + $0x48] sm:$0xff] %v665
        %710 = vst [vmem:[%s365 + $0x50] sm:$0xff] %v603
        %711 = vst [vmem:[%s365 + $0x58] sm:$0xff] %v668
        %712 = vst [vmem:[%s365 + $0x60] sm:$0xff] %v606
        %713 = vst [vmem:[%s365 + $0x68] sm:$0xff] %v671
        %714 = vst [vmem:[%s365 + $0x70] sm:$0xff] %v609
        %715 = vst [vmem:[%s365 + $0x78] sm:$0xff] %v674
        %716 = vst [vmem:[%s365 + $0x80] sm:$0xff] %v612
        %717 = vst [vmem:[%s365 + $0x88] sm:$0xff] %v677
        %718 = vst [vmem:[%s365 + $0x90] sm:$0xff] %v615
        %719 = vst [vmem:[%s365 + $0x98] sm:$0xff] %v680
        %720 = vst [vmem:[%s365 + $0xa0] sm:$0xff] %v618
        %721 = vst [vmem:[%s365 + $0xa8] sm:$0xff] %v683
        %722 = vst [vmem:[%s365 + $0xb0] sm:$0xff] %v621
        %723 = vst [vmem:[%s365 + $0xb8] sm:$0xff] %v686
        %724 = vst [vmem:[%s365 + $0xc0] sm:$0xff] %v624
        %725 = vst [vmem:[%s365 + $0xc8] sm:$0xff] %v689
        %726 = vst [vmem:[%s365 + $0xd0] sm:$0xff] %v627
        %727 = vst [vmem:[%s365 + $0xd8] sm:$0xff] %v692
        %728 = vst [vmem:[%s365 + $0xe0] sm:$0xff] %v630
        %729 = vst [vmem:[%s365 + $0xe8] sm:$0xff] %v695
        %730 = vst [vmem:[%s365 + $0xf0] sm:$0xff] %v633
        %731 = vst [vmem:[%s365 + $0xf8] sm:$0xff] %v698
        %s732 = sand.u32 %s184, 1
        %s733 = scalar_lea.sflag [#allocation5], %s732
        %s734 = sand.u32 %s184, 1
        %s735 = smul.addr %s734, 256
        %s736 = scalar_lea.vmem [#allocation11], %s735
        // Predicated region
        $region61: #{tpu_custom_call.1} parent=39 // pred_check
          %p737 = pneg %p194
        $region62: #{tpu_custom_call.1} parent=39 // pred_check_branch
          %739 = sbr.rel (%p737) target = $region64
        $region63: #{tpu_custom_call.1} parent=39 // pred_region
          %s740 = smul.u32 16, %s32
          %s741 = smul.u32 2, %s33
          %743 = vsyncadd %s733, 0
          %s744 = smul.addr %s740, 2
          %s745 = sadd.s32 %s741, %s744
          %s746 = smul.addr %s31, 32
          %s747 = sadd.s32 %s745, %s746
          %s748 = smul.addr %s747, 8
          %s749 = scalar_lea.hbm %s5, %s748
          %s750 = sshll.u32 %s736, 4
          %s751 = int_to_ptr.vmem [resolvable:$true] %s750
          %s752 = sshll.u32 %s749, 4
          %s753 = int_to_ptr.hbm [resolvable:$true] %s752
          %758 = dma.vmem_to_hbm [thread:$0]  %s751, 4096, %s753, %s733, 256, 256, 16
        $region64: #{tpu_custom_call.1} parent=39 // pred_fallthru
          _
      $region40: #{tpu_custom_call.1} parent=5 // pred_fallthru
        _
      %p759 = scmp.le.s32.totalorder 2, %s21
      // Predicated region
      $region65: #{tpu_custom_call.1} parent=5 // pred_check
        %p760 = pneg %p759
      $region66: #{tpu_custom_call.1} parent=5 // pred_check_branch
        %762 = sbr.rel (%p760) target = $region68
      $region67: #{tpu_custom_call.1} parent=5 // pred_region
        %s763 = ssub.s32 %s21, 2
        // Predicated region
        $region69: #{tpu_custom_call.1} parent=67 // pred_check
          %p764 = pneg %p200
        $region70: #{tpu_custom_call.1} parent=67 // pred_check_branch
          %766 = sbr.rel (%p764) target = $region72
        $region71: #{tpu_custom_call.1} parent=67 // pred_region
          %s767 = sand.u32 %s185, 1
          %s768 = scalar_lea.sflag [#allocation5], %s767
          %s769 = sand.u32 %s185, 1
          %s770 = smul.addr %s769, 256
          %s771 = scalar_lea.vmem [#allocation11], %s770
          %773 = dma.done %s768, 4096
        $region72: #{tpu_custom_call.1} parent=67 // pred_fallthru
          _
      $region68: #{tpu_custom_call.1} parent=5 // pred_fallthru
        _
    $region6: #{tpu_custom_call.1} parent=1 // loop_footer
      %s25 = sadd.s32 1, %s21
    $region7: #{tpu_custom_call.1} parent=1 // loop_footer_branch
      %20 = sbr.rel target = $region3
    $region8: #{tpu_custom_call.1} parent=1 // loop_exit
      _
    %774 = vsyncpa [#allocation4], 1
    %s775 = scalar_lea.sflag [#allocation4], 1
    %776 = vsyncpa %s775, 1
    %777 = vsyncpa [#allocation7], 1
    %s778 = scalar_lea.sflag [#allocation7], 1
    %779 = vsyncpa %s778, 1
    %780 = vsyncpa [#allocation10], 1
    %781 = vsyncpa [#allocation5], 1
    %s782 = scalar_lea.sflag [#allocation5], 1
    %783 = vsyncpa %s782, 1

</llo_original>
